<compile_context>
chip_gen: v7x
topology: tpu7x:2x2x1
jax: 0.10.0
libtpu: 0.0.40
codegen_flags: <defaults>
</compile_context>

<pallas_src>
import jax
import jax.numpy as jnp
from jax.experimental import pallas as pl
from jax.experimental.pallas import tpu as pltpu


LANE = 128


def _ceil_to(n, m):
    return -(-n // m) * m


# --------------------------------------------------------------------------- #
# Kernel
# --------------------------------------------------------------------------- #
def _fused_kernel(ids_ref, mask_ref, feat_ref,
                  emb_ref, wf_ref, bf_ref,
                  w1_ref, b1_ref, w2_ref, b2_ref,
                  out_ref):
    ids = ids_ref[...]                                   # [TB, S] int32
    mask = mask_ref[...]                                 # [TB, S] f32
    tb, s = ids.shape
    v = emb_ref.shape[0]

    # ---- BertConverter tail: lookup + masked mean pooling, fused on the MXU --
    #   sum_s mask[b,s] * emb[ids[b,s], :]  ==  (sum_s mask * onehot(ids)) @ emb
    vocab_iota = jax.lax.broadcasted_iota(jnp.int32, (tb, s, v), 2)
    onehot = (ids[:, :, None] == vocab_iota).astype(jnp.float32)      # [TB,S,V]
    counts = jnp.sum(onehot * mask[:, :, None], axis=1)               # [TB,V]
    summed = jnp.dot(counts.astype(emb_ref.dtype), emb_ref[...],
                     preferred_element_type=jnp.float32)              # [TB,H]
    denom = jnp.sum(mask, axis=1, keepdims=True)                      # [TB,1]
    inv_denom = pl.reciprocal(jnp.maximum(denom, 1e-9), approx=True)  # EUP
    bert_emb = summed * inv_denom                                     # [TB,H]

    # ---- FeatureConverter: Linear + ReLU -------------------------------------
    feat_emb = jnp.dot(feat_ref[...].astype(wf_ref.dtype), wf_ref[...],
                       preferred_element_type=jnp.float32) + bf_ref[...]
    feat_emb = jnp.maximum(feat_emb, 0.0)                             # [TB,FD]

    # ---- concat + DenseConverter layer 1 (single fused MXU matmul) -----------
    joint = jnp.concatenate([bert_emb, feat_emb], axis=-1)            # [TB,H+FD]
    h = jnp.dot(joint.astype(w1_ref.dtype), w1_ref[...],
                preferred_element_type=jnp.float32) + b1_ref[...]
    h = jnp.maximum(h, 0.0)                                           # [TB,HID]

    # ---- DenseConverter layer 2 (HID -> 1): VPU multiply + lane reduction ----
    logit = jnp.sum(h * w2_ref[...], axis=-1, keepdims=True) + b2_ref[...]
    out_ref[...] = 1.0 / (1.0 + jnp.exp(-logit))                      # sigmoid


# --------------------------------------------------------------------------- #
# Parameters
# --------------------------------------------------------------------------- #
def init_params(key, *, vocab=100, h_bert=32, f_in=16, f_dim=16, hid=32):
    ks = jax.random.split(key, 5)
    s = 0.1
    return {
        "emb_table": s * jax.random.normal(ks[0], (vocab, h_bert), jnp.float32),
        "wf":      s * jax.random.normal(ks[1], (f_in, f_dim), jnp.float32),
        "bf":      jnp.zeros((1, f_dim), jnp.float32),
        "w1_bert": s * jax.random.normal(ks[2], (h_bert, hid), jnp.float32),
        "w1_feat": s * jax.random.normal(ks[3], (f_dim, hid), jnp.float32),
        "b1":      jnp.zeros((1, hid), jnp.float32),
        "w2":      s * jax.random.normal(ks[4], (hid, 1), jnp.float32),
        "b2":      jnp.zeros((1, 1), jnp.float32),
    }


def pad_params(p, *, compute_dtype=jnp.bfloat16):
    """Zero-pad every feature dim up to a multiple of 128 lanes (exact: padded
    rows/cols are zero so they contribute nothing) and cast MXU operands to bf16.
    Done once at init, not per forward call."""
    def pad2(x, rows, cols):
        return jnp.pad(x, ((0, rows - x.shape[0]), (0, cols - x.shape[1])))

    vocab, h_bert = p["emb_table"].shape
    f_in, f_dim = p["wf"].shape
    hid = p["w1_bert"].shape[1]
    V, H, F, FD, HD = (_ceil_to(d, LANE) for d in (vocab, h_bert, f_in, f_dim, hid))

    w1 = jnp.concatenate(
        [pad2(p["w1_bert"], H, HD), pad2(p["w1_feat"], FD, HD)], axis=0)
    return {
        "emb_table": pad2(p["emb_table"], V, H).astype(compute_dtype),
        "wf":        pad2(p["wf"], F, FD).astype(compute_dtype),
        "bf":        pad2(p["bf"], 1, FD),                    # f32 (VPU add)
        "w1":        w1.astype(compute_dtype),                # [H+FD, HD] bf16
        "b1":        pad2(p["b1"], 1, HD),                    # f32 (VPU add)
        "w2_row":    pad2(p["w2"].T, 1, HD),                  # f32 (VPU path)
        "b2":        p["b2"],                                 # (1,1) f32
    }


# --------------------------------------------------------------------------- #
# Wrapper
# --------------------------------------------------------------------------- #
def fake_news_binary_forward(input_ids, attention_mask, features, kp, *, block_b=128):
    """Returns prob of shape [B, 1] (f32)."""
    B, S = input_ids.shape
    f_pad = kp["wf"].shape[0]

    ids = input_ids.astype(jnp.int32)
    mask = attention_mask.astype(jnp.float32)
    feat = jnp.pad(features.astype(jnp.float32),
                   ((0, 0), (0, f_pad - features.shape[1])))

    # Batch tile kept modest so 2x double-buffered streams + resident weights fit
    # comfortably under v7x's smaller (64 MiB) per-TC VMEM as well.
    tb = min(block_b, B)
    grid = (pl.cdiv(B, tb),)

    def row_spec(width):
        return pl.BlockSpec((tb, width), lambda b: (b, 0))

    def resident(arr):  # weights: same block every grid step -> stays in VMEM
        return pl.BlockSpec(arr.shape, lambda b: (0, 0))

    return pl.pallas_call(
        _fused_kernel,
        out_shape=jax.ShapeDtypeStruct((B, 1), jnp.float32),
        grid=grid,
        in_specs=[
            row_spec(S),                    # input_ids
            row_spec(S),                    # attention_mask
            row_spec(f_pad),                # features (lane-padded)
            resident(kp["emb_table"]),
            resident(kp["wf"]),
            resident(kp["bf"]),
            resident(kp["w1"]),
            resident(kp["b1"]),
            resident(kp["w2_row"]),
            resident(kp["b2"]),
        ],
        out_specs=pl.BlockSpec((tb, 1), lambda b: (b, 0)),
        compiler_params=pltpu.CompilerParams(
            dimension_semantics=("parallel",)),
    )(ids, mask, feat,
      kp["emb_table"], kp["wf"], kp["bf"],
      kp["w1"], kp["b1"], kp["w2_row"], kp["b2"])


# --------------------------------------------------------------------------- #
# Pure-JAX reference (unpadded f32) for correctness check
# --------------------------------------------------------------------------- #
def reference_forward(input_ids, attention_mask, features, p):
    tok = jnp.take(p["emb_table"], input_ids, axis=0)               # [B,S,H]
    m = attention_mask.astype(jnp.float32)
    denom = jnp.maximum(jnp.sum(m, axis=1, keepdims=True), 1e-9)
    bert = jnp.sum(tok * m[:, :, None], axis=1) / denom
    feat_emb = jnp.maximum(features @ p["wf"] + p["bf"], 0.0)
    joint = jnp.concatenate([bert, feat_emb], axis=-1)
    w1 = jnp.concatenate([p["w1_bert"], p["w1_feat"]], axis=0)
    h = jnp.maximum(joint @ w1 + p["b1"], 0.0)
    logit = h @ p["w2"] + p["b2"]
    return jax.nn.sigmoid(logit)


if __name__ == "__main__":
    B, S, VOCAB, H_BERT, F_IN, F_DIM, HID = 2, 8, 100, 32, 16, 16, 32

    key = jax.random.PRNGKey(0)
    k_params, k_ids, k_feat = jax.random.split(key, 3)

    params = init_params(k_params, vocab=VOCAB, h_bert=H_BERT,
                         f_in=F_IN, f_dim=F_DIM, hid=HID)
    kparams = pad_params(params)   # padded/bf16 kernel params, built once

    input_ids = jax.random.randint(k_ids, (B, S), 0, VOCAB, dtype=jnp.int32)
    # mask: first 6 tokens valid, last 2 padded
    attention_mask = jnp.concatenate(
        [jnp.ones((B, 6), jnp.float32), jnp.zeros((B, 2), jnp.float32)], axis=1)
    feature_inputs = jax.random.normal(k_feat, (B, F_IN), jnp.float32)

    prob = fake_news_binary_forward(input_ids, attention_mask, feature_inputs, kparams)
    jax.block_until_ready(prob)

    assert prob.shape == (B, 1)
    assert bool(jnp.all((prob >= 0.0) & (prob <= 1.0)))

    ref = reference_forward(input_ids, attention_mask, feature_inputs, params)
    assert bool(jnp.allclose(prob, ref, atol=2e-2)), (prob, ref)

    print("KERNEL_OK")
</pallas_src>

<mosaic_0001>
module attributes {stable_mosaic.version = 11 : i64} {
  func.func @_fused_kernel(%arg0: i32, %arg1: memref<2x8xi32, #tpu.memory_space<vmem>>, %arg2: memref<2x8xf32, #tpu.memory_space<vmem>>, %arg3: memref<2x128xf32, #tpu.memory_space<vmem>>, %arg4: memref<128x128xbf16, #tpu.memory_space<vmem>>, %arg5: memref<128x128xbf16, #tpu.memory_space<vmem>>, %arg6: memref<1x128xf32, #tpu.memory_space<vmem>>, %arg7: memref<256x128xbf16, #tpu.memory_space<vmem>>, %arg8: memref<1x128xf32, #tpu.memory_space<vmem>>, %arg9: memref<1x128xf32, #tpu.memory_space<vmem>>, %arg10: memref<1x1xf32, #tpu.memory_space<vmem>>, %arg11: memref<2x1xf32, #tpu.memory_space<vmem>>) attributes {dimension_semantics = [#tpu.dimension_semantics<parallel>], iteration_bounds = array<i64: 1>, scalar_prefetch = 0 : i64, scratch_operands = 0 : i64, tpu.core_type = #tpu.core_type<tc>, window_params = [{transform_indices = @transform_0, window_bounds = array<i64: 2, 8>}, {transform_indices = @transform_1, window_bounds = array<i64: 2, 8>}, {transform_indices = @transform_2, window_bounds = array<i64: 2, 128>}, {pipeline_mode = #tpu.pipeline_mode<synchronous>, transform_indices = @transform_3, window_bounds = array<i64: 128, 128>}, {pipeline_mode = #tpu.pipeline_mode<synchronous>, transform_indices = @transform_4, window_bounds = array<i64: 128, 128>}, {pipeline_mode = #tpu.pipeline_mode<synchronous>, transform_indices = @transform_5, window_bounds = array<i64: 1, 128>}, {pipeline_mode = #tpu.pipeline_mode<synchronous>, transform_indices = @transform_6, window_bounds = array<i64: 256, 128>}, {pipeline_mode = #tpu.pipeline_mode<synchronous>, transform_indices = @transform_7, window_bounds = array<i64: 1, 128>}, {pipeline_mode = #tpu.pipeline_mode<synchronous>, transform_indices = @transform_8, window_bounds = array<i64: 1, 128>}, {pipeline_mode = #tpu.pipeline_mode<synchronous>, transform_indices = @transform_9, window_bounds = array<i64: 1, 1>}, {transform_indices = @transform_10, window_bounds = array<i64: 2, 1>}]} {
    %c0 = arith.constant 0 : index
    %c0_0 = arith.constant 0 : index
    %0 = vector.load %arg1[%c0, %c0_0] : memref<2x8xi32, #tpu.memory_space<vmem>>, vector<2x8xi32>
    %c0_1 = arith.constant 0 : index
    %c0_2 = arith.constant 0 : index
    %1 = vector.load %arg2[%c0_1, %c0_2] : memref<2x8xf32, #tpu.memory_space<vmem>>, vector<2x8xf32>
    %2 = tpu.iota {dimensions = array<i32: 2>} : vector<2x8x128xi32>
    %3 = vector.shape_cast %0 : vector<2x8xi32> to vector<2x8x1xi32>
    %4 = vector.broadcast %3 : vector<2x8x1xi32> to vector<2x8x128xi32>
    %5 = arith.cmpi eq, %4, %2 : vector<2x8x128xi32>
    %6 = arith.extui %5 : vector<2x8x128xi1> to vector<2x8x128xi32>
    %7 = arith.sitofp %6 : vector<2x8x128xi32> to vector<2x8x128xf32>
    %8 = vector.shape_cast %1 : vector<2x8xf32> to vector<2x8x1xf32>
    %9 = vector.broadcast %8 : vector<2x8x1xf32> to vector<2x8x128xf32>
    %10 = arith.mulf %7, %9 : vector<2x8x128xf32>
    %cst = arith.constant dense<0.000000e+00> : vector<2x128xf32>
    %11 = vector.multi_reduction <add>, %10, %cst [1] : vector<2x8x128xf32> to vector<2x128xf32>
    %12 = arith.truncf %11 : vector<2x128xf32> to vector<2x128xbf16>
    %c0_3 = arith.constant 0 : index
    %c0_4 = arith.constant 0 : index
    %13 = vector.load %arg4[%c0_3, %c0_4] : memref<128x128xbf16, #tpu.memory_space<vmem>>, vector<128x128xbf16>
    %cst_5 = arith.constant dense<0.000000e+00> : vector<2x128xf32>
    %14 = tpu.matmul %12, %13, %cst_5 {dimension_numbers = #tpu.dot_dimension_numbers<[1], [0], [0], [1], [0, 0, 1, 1], [], []>} : vector<2x128xbf16>, vector<128x128xbf16>, vector<2x128xf32> -> vector<2x128xf32>
    %cst_6 = arith.constant dense<0.000000e+00> : vector<2xf32>
    %15 = vector.multi_reduction <add>, %1, %cst_6 [1] : vector<2x8xf32> to vector<2xf32>
    %16 = vector.shape_cast %15 : vector<2xf32> to vector<2x1xf32>
    %cst_7 = arith.constant 9.99999971E-10 : f32
    %17 = vector.broadcast %cst_7 : f32 to vector<2x1xf32>
    %18 = arith.maximumf %16, %17 : vector<2x1xf32>
    %19 = tpu.reciprocal %18 {approx = true} : vector<2x1xf32> -> vector<2x1xf32>
    %20 = vector.broadcast %19 : vector<2x1xf32> to vector<2x128xf32>
    %21 = arith.mulf %14, %20 : vector<2x128xf32>
    %c0_8 = arith.constant 0 : index
    %c0_9 = arith.constant 0 : index
    %22 = vector.load %arg3[%c0_8, %c0_9] : memref<2x128xf32, #tpu.memory_space<vmem>>, vector<2x128xf32>
    %23 = arith.truncf %22 : vector<2x128xf32> to vector<2x128xbf16>
    %c0_10 = arith.constant 0 : index
    %c0_11 = arith.constant 0 : index
    %24 = vector.load %arg5[%c0_10, %c0_11] : memref<128x128xbf16, #tpu.memory_space<vmem>>, vector<128x128xbf16>
    %cst_12 = arith.constant dense<0.000000e+00> : vector<2x128xf32>
    %25 = tpu.matmul %23, %24, %cst_12 {dimension_numbers = #tpu.dot_dimension_numbers<[1], [0], [0], [1], [0, 0, 1, 1], [], []>} : vector<2x128xbf16>, vector<128x128xbf16>, vector<2x128xf32> -> vector<2x128xf32>
    %c0_13 = arith.constant 0 : index
    %c0_14 = arith.constant 0 : index
    %26 = vector.load %arg6[%c0_13, %c0_14] : memref<1x128xf32, #tpu.memory_space<vmem>>, vector<1x128xf32>
    %27 = vector.broadcast %26 : vector<1x128xf32> to vector<2x128xf32>
    %28 = arith.addf %25, %27 : vector<2x128xf32>
    %cst_15 = arith.constant 0.000000e+00 : f32
    %29 = vector.broadcast %cst_15 : f32 to vector<2x128xf32>
    %30 = arith.maximumf %28, %29 : vector<2x128xf32>
    %31 = tpu.concatenate %21, %30 in 1 : vector<2x128xf32>, vector<2x128xf32> -> vector<2x256xf32>
    %32 = arith.truncf %31 : vector<2x256xf32> to vector<2x256xbf16>
    %c0_16 = arith.constant 0 : index
    %c0_17 = arith.constant 0 : index
    %33 = vector.load %arg7[%c0_16, %c0_17] : memref<256x128xbf16, #tpu.memory_space<vmem>>, vector<256x128xbf16>
    %cst_18 = arith.constant dense<0.000000e+00> : vector<2x128xf32>
    %34 = tpu.matmul %32, %33, %cst_18 {dimension_numbers = #tpu.dot_dimension_numbers<[1], [0], [0], [1], [0, 0, 1, 1], [], []>} : vector<2x256xbf16>, vector<256x128xbf16>, vector<2x128xf32> -> vector<2x128xf32>
    %c0_19 = arith.constant 0 : index
    %c0_20 = arith.constant 0 : index
    %35 = vector.load %arg8[%c0_19, %c0_20] : memref<1x128xf32, #tpu.memory_space<vmem>>, vector<1x128xf32>
    %36 = vector.broadcast %35 : vector<1x128xf32> to vector<2x128xf32>
    %37 = arith.addf %34, %36 : vector<2x128xf32>
    %cst_21 = arith.constant 0.000000e+00 : f32
    %38 = vector.broadcast %cst_21 : f32 to vector<2x128xf32>
    %39 = arith.maximumf %37, %38 : vector<2x128xf32>
    %c0_22 = arith.constant 0 : index
    %c0_23 = arith.constant 0 : index
    %40 = vector.load %arg9[%c0_22, %c0_23] : memref<1x128xf32, #tpu.memory_space<vmem>>, vector<1x128xf32>
    %41 = vector.broadcast %40 : vector<1x128xf32> to vector<2x128xf32>
    %42 = arith.mulf %39, %41 : vector<2x128xf32>
    %cst_24 = arith.constant dense<0.000000e+00> : vector<2xf32>
    %43 = vector.multi_reduction <add>, %42, %cst_24 [1] : vector<2x128xf32> to vector<2xf32>
    %44 = vector.shape_cast %43 : vector<2xf32> to vector<2x1xf32>
    %c0_25 = arith.constant 0 : index
    %c0_26 = arith.constant 0 : index
    %45 = vector.load %arg10[%c0_25, %c0_26] : memref<1x1xf32, #tpu.memory_space<vmem>>, vector<1x1xf32>
    %46 = vector.broadcast %45 : vector<1x1xf32> to vector<2x1xf32>
    %47 = arith.addf %44, %46 : vector<2x1xf32>
    %cst_27 = arith.constant 0.000000e+00 : f32
    %48 = vector.broadcast %cst_27 : f32 to vector<2x1xf32>
    %49 = arith.subf %48, %47 : vector<2x1xf32>
    %50 = math.exp %49 : vector<2x1xf32>
    %cst_28 = arith.constant 1.000000e+00 : f32
    %51 = vector.broadcast %cst_28 : f32 to vector<2x1xf32>
    %52 = arith.addf %51, %50 : vector<2x1xf32>
    %cst_29 = arith.constant 1.000000e+00 : f32
    %53 = vector.broadcast %cst_29 : f32 to vector<2x1xf32>
    %54 = arith.divf %53, %52 : vector<2x1xf32>
    %c0_30 = arith.constant 0 : index
    %c0_31 = arith.constant 0 : index
    %55 = vector.load %arg11[%c0_30, %c0_31] : memref<2x1xf32, #tpu.memory_space<vmem>>, vector<2x1xf32>
    tpu.vector_store %arg11[%c0_30, %c0_31], %54 {strides = array<i32>} : memref<2x1xf32, #tpu.memory_space<vmem>>, vector<2x1xf32>,
    return
  }
  func.func @transform_0(%arg0: i32) -> (i32, i32) {
    %c0_i32 = arith.constant 0 : i32
    %c0_i32_0 = arith.constant 0 : i32
    return %arg0, %c0_i32 : i32, i32
  }
  func.func @transform_1(%arg0: i32) -> (i32, i32) {
    %c0_i32 = arith.constant 0 : i32
    %c0_i32_0 = arith.constant 0 : i32
    return %arg0, %c0_i32 : i32, i32
  }
  func.func @transform_2(%arg0: i32) -> (i32, i32) {
    %c0_i32 = arith.constant 0 : i32
    %c0_i32_0 = arith.constant 0 : i32
    return %arg0, %c0_i32 : i32, i32
  }
  func.func @transform_3(%arg0: i32) -> (i32, i32) {
    %c0_i32 = arith.constant 0 : i32
    %c0_i32_0 = arith.constant 0 : i32
    %c0_i32_1 = arith.constant 0 : i32
    return %c0_i32, %c0_i32_0 : i32, i32
  }
  func.func @transform_4(%arg0: i32) -> (i32, i32) {
    %c0_i32 = arith.constant 0 : i32
    %c0_i32_0 = arith.constant 0 : i32
    %c0_i32_1 = arith.constant 0 : i32
    return %c0_i32, %c0_i32_0 : i32, i32
  }
  func.func @transform_5(%arg0: i32) -> (i32, i32) {
    %c0_i32 = arith.constant 0 : i32
    %c0_i32_0 = arith.constant 0 : i32
    %c0_i32_1 = arith.constant 0 : i32
    return %c0_i32, %c0_i32_0 : i32, i32
  }
  func.func @transform_6(%arg0: i32) -> (i32, i32) {
    %c0_i32 = arith.constant 0 : i32
    %c0_i32_0 = arith.constant 0 : i32
    %c0_i32_1 = arith.constant 0 : i32
    return %c0_i32, %c0_i32_0 : i32, i32
  }
  func.func @transform_7(%arg0: i32) -> (i32, i32) {
    %c0_i32 = arith.constant 0 : i32
    %c0_i32_0 = arith.constant 0 : i32
    %c0_i32_1 = arith.constant 0 : i32
    return %c0_i32, %c0_i32_0 : i32, i32
  }
  func.func @transform_8(%arg0: i32) -> (i32, i32) {
    %c0_i32 = arith.constant 0 : i32
    %c0_i32_0 = arith.constant 0 : i32
    %c0_i32_1 = arith.constant 0 : i32
    return %c0_i32, %c0_i32_0 : i32, i32
  }
  func.func @transform_9(%arg0: i32) -> (i32, i32) {
    %c0_i32 = arith.constant 0 : i32
    %c0_i32_0 = arith.constant 0 : i32
    %c0_i32_1 = arith.constant 0 : i32
    return %c0_i32, %c0_i32_0 : i32, i32
  }
  func.func @transform_10(%arg0: i32) -> (i32, i32) {
    %c0_i32 = arith.constant 0 : i32
    %c0_i32_0 = arith.constant 0 : i32
    return %arg0, %c0_i32 : i32, i32
  }
}

</mosaic_0001>

<llo_original>
// kernel: tpu_custom_call.1
$region0: #{tpu_custom_call.1}
  #allocation0 [shape = 'u32[]', space=smem, size = 0x4, offset = 0x4, fixed_abs, tag = 'smem constant byte address 0x4 - core index']
  #allocation1 [shape = 'u32[144,128]{1,0:T(1,128)}', space=vmem, size = 0x12000, scoped, tag = 'internal scratch']
  #allocation2 [shape = 'f32[1,1]{1,0:T(1,128)S(1)}', space=vmem, size = 0x200, scoped, tag = 'scoped memory for tpu_custom_call.1']
  %s0 = inlined_call_operand.vmem [shape: s32[2,8], index: 0, kind: input, shape index: {}]
  %s1 = inlined_call_operand.vmem [shape: f32[2,8], index: 1, kind: input, shape index: {}]
  %s2 = inlined_call_operand.vmem [shape: f32[2,128], index: 2, kind: input, shape index: {}]
  %s3 = inlined_call_operand.hbm [shape: bf16[128,128], index: 3, kind: input, shape index: {}]
  %s4 = inlined_call_operand.hbm [shape: bf16[128,128], index: 4, kind: input, shape index: {}]
  %s5 = inlined_call_operand.vmem [shape: f32[1,128], index: 5, kind: input, shape index: {}]
  %s6 = inlined_call_operand.hbm [shape: bf16[256,128], index: 6, kind: input, shape index: {}]
  %s7 = inlined_call_operand.vmem [shape: f32[1,128], index: 7, kind: input, shape index: {}]
  %s8 = inlined_call_operand.vmem [shape: f32[1,128], index: 8, kind: input, shape index: {}]
  %s9 = inlined_call_operand.<no memory space> [shape: f32[1,1], index: 9, kind: input, shape index: {}]
  %s10 = inlined_call_operand.vmem [shape: f32[2,1], index: 10, kind: output, shape index: {}]
  %s11 = sld [smem:[#allocation0]]
  $region62: #{tpu_custom_call.1} parent=0
    _
  %s13 = ssub.s32 1, %s11
  %s14 = scalar_select 0, %s13, %s11
  %v15 = vstv %s9
  %16 = vst [vmem:[#allocation2] sm:$0x1] %v15
  $region1: #{tpu_custom_call.1} parent=0
    #allocation3 [shape = 'u8[32768]{0}', space=vmem, size = 0x8000, scoped, tag = 'input window, operand 3, single buffered']
    #allocation4 [shape = 's32[1]{0}', space=sflag, size = 0x4, scoped, tag = 'scoped memory for tpu_custom_call.1']
    #allocation5 [shape = 'u8[32768]{0}', space=vmem, size = 0x8000, scoped, tag = 'input window, operand 4, single buffered']
    #allocation6 [shape = 's32[1]{0}', space=sflag, size = 0x4, scoped, tag = 'scoped memory for tpu_custom_call.1']
    #allocation7 [shape = 'u8[65536]{0}', space=vmem, size = 0x10000, scoped, tag = 'input window, operand 6, single buffered']
    %17 = vsyncpa [#allocation4], 0
    %18 = vsyncpa [#allocation6], 0
    // Predicated region
    $region2: #{tpu_custom_call.1} parent=1 // pred_check
      _
    $region3: #{tpu_custom_call.1} parent=1 // pred_check_branch
      %20 = sbr.rel (0) target = $region5
    $region4: #{tpu_custom_call.1} parent=1 // pred_region
      _
    $region5: #{tpu_custom_call.1} parent=1 // pred_fallthru
      _
    // Predicated region
    $region6: #{tpu_custom_call.1} parent=1 // pred_check
      _
    $region7: #{tpu_custom_call.1} parent=1 // pred_check_branch
      %22 = sbr.rel (0) target = $region9
    $region8: #{tpu_custom_call.1} parent=1 // pred_region
      _
    $region9: #{tpu_custom_call.1} parent=1 // pred_fallthru
      _
    // Predicated region
    $region10: #{tpu_custom_call.1} parent=1 // pred_check
      _
    $region11: #{tpu_custom_call.1} parent=1 // pred_check_branch
      %24 = sbr.rel (0) target = $region13
    $region12: #{tpu_custom_call.1} parent=1 // pred_region
      _
    $region13: #{tpu_custom_call.1} parent=1 // pred_fallthru
      _
    // Predicated region
    $region14: #{tpu_custom_call.1} parent=1 // pred_check
      _
    $region15: #{tpu_custom_call.1} parent=1 // pred_check_branch
      %26 = sbr.rel (0) target = $region17
    $region16: #{tpu_custom_call.1} parent=1 // pred_region
      %s28 = ssub.s32 1024, 1024
      %29 = vsyncadd [#allocation4], %s28
      %s30 = sshll.u32 [#allocation3], 4
      %s31 = int_to_ptr.vmem [resolvable:$true] %s30
      %36 = dma.hbm_to_vmem [thread:$0]  %s3, 1024, %s31, [#allocation4], 64, 64, 4
    $region17: #{tpu_custom_call.1} parent=1 // pred_fallthru
      _
    // Predicated region
    $region18: #{tpu_custom_call.1} parent=1 // pred_check
      _
    $region19: #{tpu_custom_call.1} parent=1 // pred_check_branch
      %38 = sbr.rel (0) target = $region21
    $region20: #{tpu_custom_call.1} parent=1 // pred_region
      %s40 = ssub.s32 1024, 1024
      %41 = vsyncadd [#allocation6], %s40
      %s42 = sshll.u32 [#allocation5], 4
      %s43 = int_to_ptr.vmem [resolvable:$true] %s42
      %48 = dma.hbm_to_vmem [thread:$0]  %s4, 1024, %s43, [#allocation6], 64, 64, 4
    $region21: #{tpu_custom_call.1} parent=1 // pred_fallthru
      _
    // Predicated region
    $region22: #{tpu_custom_call.1} parent=1 // pred_check
      _
    $region23: #{tpu_custom_call.1} parent=1 // pred_check_branch
      %50 = sbr.rel (0) target = $region25
    $region24: #{tpu_custom_call.1} parent=1 // pred_region
      _
    $region25: #{tpu_custom_call.1} parent=1 // pred_fallthru
      _
    // Predicated region
    $region26: #{tpu_custom_call.1} parent=1 // pred_check
      _
    $region27: #{tpu_custom_call.1} parent=1 // pred_check_branch
      %52 = sbr.rel (0) target = $region29
    $region28: #{tpu_custom_call.1} parent=1 // pred_region
      %s54 = ssub.s32 2048, 2048
      %55 = vsyncadd [#allocation6], %s54
      %s56 = sshll.u32 [#allocation7], 4
      %s57 = int_to_ptr.vmem [resolvable:$true] %s56
      %62 = dma.hbm_to_vmem [thread:$0]  %s6, 2048, %s57, [#allocation6], 64, 64, 4
    $region29: #{tpu_custom_call.1} parent=1 // pred_fallthru
      _
    // Predicated region
    $region30: #{tpu_custom_call.1} parent=1 // pred_check
      _
    $region31: #{tpu_custom_call.1} parent=1 // pred_check_branch
      %64 = sbr.rel (0) target = $region33
    $region32: #{tpu_custom_call.1} parent=1 // pred_region
      _
    $region33: #{tpu_custom_call.1} parent=1 // pred_fallthru
      _
    // Predicated region
    $region34: #{tpu_custom_call.1} parent=1 // pred_check
      _
    $region35: #{tpu_custom_call.1} parent=1 // pred_check_branch
      %66 = sbr.rel (0) target = $region37
    $region36: #{tpu_custom_call.1} parent=1 // pred_region
      _
    $region37: #{tpu_custom_call.1} parent=1 // pred_fallthru
      _
    // Predicated region
    $region38: #{tpu_custom_call.1} parent=1 // pred_check
      _
    $region39: #{tpu_custom_call.1} parent=1 // pred_check_branch
      %68 = sbr.rel (0) target = $region41
    $region40: #{tpu_custom_call.1} parent=1 // pred_region
      _
    $region41: #{tpu_custom_call.1} parent=1 // pred_fallthru
      _
    // Predicated region
    $region42: #{tpu_custom_call.1} parent=1 // pred_check
      _
    $region43: #{tpu_custom_call.1} parent=1 // pred_check_branch
      %70 = sbr.rel (0) target = $region45
    $region44: #{tpu_custom_call.1} parent=1 // pred_region
      %71 = dma.done [#allocation4], 1024
    $region45: #{tpu_custom_call.1} parent=1 // pred_fallthru
      _
    // Predicated region
    $region46: #{tpu_custom_call.1} parent=1 // pred_check
      _
    $region47: #{tpu_custom_call.1} parent=1 // pred_check_branch
      %73 = sbr.rel (0) target = $region49
    $region48: #{tpu_custom_call.1} parent=1 // pred_region
      %74 = dma.done [#allocation6], 1024
    $region49: #{tpu_custom_call.1} parent=1 // pred_fallthru
      _
    // Predicated region
    $region50: #{tpu_custom_call.1} parent=1 // pred_check
      _
    $region51: #{tpu_custom_call.1} parent=1 // pred_check_branch
      %76 = sbr.rel (0) target = $region53
    $region52: #{tpu_custom_call.1} parent=1 // pred_region
      %77 = dma.done [#allocation6], 2048
    $region53: #{tpu_custom_call.1} parent=1 // pred_fallthru
      _
    %v79 = vld [vmem:[%s0] sm:$0x3]
    %v80 = vld [vmem:[%s1] sm:$0x3]
    %v81 = vlaneseq
    %v82 = vand.u32 %v81, 127
    %v83 = vlaneseq
    %v84 = vshrl.u32 %v83, 7
    %v85 = vsub.s32 0, %v84
    %v86 = vrot.slane %v79, %v85
    %88 = vbcast.lane.b32.xlu0 %v86, 256
    %v89 = vpop.permute.xlu0 %88
    %v90 = vlaneseq
    %v91 = vshrl.u32 %v90, 7
    %v92 = vsub.s32 1, %v91
    %v93 = vrot.slane %v79, %v92
    %95 = vbcast.lane.b32.xlu0 %v93, 256
    %v96 = vpop.permute.xlu0 %95
    %vm97 = vcmp.eq.s32.totalorder %v89, %v82
    %vm98 = vcmp.eq.s32.totalorder %v96, %v82
    %v99 = vsel %vm97, 1, 0
    %v100 = vsel %vm98, 1, 0
    %v101 = vcvt.s32.f32 %v99
    %v102 = vcvt.s32.f32 %v100
    %v103 = vlaneseq
    %v104 = vshrl.u32 %v103, 7
    %v105 = vsub.s32 0, %v104
    %v106 = vrot.slane %v80, %v105
    %108 = vbcast.lane.b32.xlu0 %v106, 256
    %v109 = vpop.permute.xlu0 %108
    %v110 = vlaneseq
    %v111 = vshrl.u32 %v110, 7
    %v112 = vsub.s32 1, %v111
    %v113 = vrot.slane %v80, %v112
    %115 = vbcast.lane.b32.xlu0 %v113, 256
    %v116 = vpop.permute.xlu0 %115
    %v117 = vmul.f32 %v101, %v109
    %v118 = vmul.f32 %v102, %v116
    %v119 = vrot.slane %v117, 4
    %v120 = vadd.f32 %v117, %v119
    %v121 = vrot.slane %v120, 2
    %v122 = vadd.f32 %v120, %v121
    %v123 = vrot.slane %v122, 1
    %v124 = vadd.f32 %v122, %v123
    %v125 = vrot.slane %v118, 4
    %v126 = vadd.f32 %v118, %v125
    %v127 = vrot.slane %v126, 2
    %v128 = vadd.f32 %v126, %v127
    %v129 = vrot.slane %v128, 1
    %v130 = vadd.f32 %v128, %v129
    %v131 = vpack.c.bf16 %v124, %v124
    %v132 = vpack.c.bf16 %v130, %v130
    %v133 = vld [vmem:[#allocation3] sm:$0xf]
    %v134 = vld [vmem:[#allocation3 + $0x4] sm:$0xf]
    %v135 = vld [vmem:[#allocation3 + $0x8] sm:$0xf]
    %v136 = vld [vmem:[#allocation3 + $0xc] sm:$0xf]
    %v137 = vld [vmem:[#allocation3 + $0x10] sm:$0xf]
    %v138 = vld [vmem:[#allocation3 + $0x14] sm:$0xf]
    %v139 = vld [vmem:[#allocation3 + $0x18] sm:$0xf]
    %v140 = vld [vmem:[#allocation3 + $0x1c] sm:$0xf]
    %v141 = vld [vmem:[#allocation3 + $0x20] sm:$0xf]
    %v142 = vld [vmem:[#allocation3 + $0x24] sm:$0xf]
    %v143 = vld [vmem:[#allocation3 + $0x28] sm:$0xf]
    %v144 = vld [vmem:[#allocation3 + $0x2c] sm:$0xf]
    %v145 = vld [vmem:[#allocation3 + $0x30] sm:$0xf]
    %v146 = vld [vmem:[#allocation3 + $0x34] sm:$0xf]
    %v147 = vld [vmem:[#allocation3 + $0x38] sm:$0xf]
    %v148 = vld [vmem:[#allocation3 + $0x3c] sm:$0xf]
    %v151 = vunpack.c.l.b16 %v131
    %v152 = vunpack.c.l.b16 %v132
    %vm153 = vcmask 1041409
    %v154 = vsel %vm153, %v152, %v151
    %v155 = vpack.c.b16 %v154, %v154
    %v173 = vunpack.c.l.b16 %v133
    %v174 = vunpack.c.l.b16 %v134
    %v175 = vunpack.c.l.b16 %v135
    %v176 = vunpack.c.l.b16 %v136
    %v177 = vunpack.c.l.b16 %v137
    %v178 = vunpack.c.l.b16 %v138
    %v179 = vunpack.c.l.b16 %v139
    %v180 = vunpack.c.l.b16 %v140
    %v181 = vunpack.c.l.b16 %v141
    %v182 = vunpack.c.l.b16 %v142
    %v183 = vunpack.c.l.b16 %v143
    %v184 = vunpack.c.l.b16 %v144
    %v185 = vunpack.c.l.b16 %v145
    %v186 = vunpack.c.l.b16 %v146
    %v187 = vunpack.c.l.b16 %v147
    %v188 = vunpack.c.l.b16 %v148
    %v189 = vpack.c.b16 %v174, %v173
    %v190 = vpack.c.b16 %v176, %v175
    %v191 = vpack.c.b16 %v178, %v177
    %v192 = vpack.c.b16 %v180, %v179
    %v193 = vpack.c.b16 %v182, %v181
    %v194 = vpack.c.b16 %v184, %v183
    %v195 = vpack.c.b16 %v186, %v185
    %v196 = vpack.c.b16 %v188, %v187
    %205 = vmatprep.subr.bf16.mxu0 0
    %206 = vmatpush1.bf16.msra.mxu0 %v189
    %207 = vmatprep.subr.bf16.mxu0 0
    %208 = vmatpush1.bf16.msra.mxu0 %v190
    %209 = vmatprep.subr.bf16.mxu0 0
    %210 = vmatpush1.bf16.msra.mxu0 %v191
    %211 = vmatprep.subr.bf16.mxu0 0
    %212 = vmatpush1.bf16.msra.mxu0 %v192
    %213 = vmatprep.subr.bf16.mxu0 0
    %214 = vmatpush1.bf16.msra.mxu0 %v193
    %215 = vmatprep.subr.bf16.mxu0 0
    %216 = vmatpush1.bf16.msra.mxu0 %v194
    %217 = vmatprep.subr.bf16.mxu0 0
    %218 = vmatpush1.bf16.msra.mxu0 %v195
    %219 = vmatprep.subr.bf16.mxu0 0
    %220 = vmatpush1.bf16.msra.mxu0 %v196
    %221 = vmatprep.subr.bf16.mxu0 0
    %222 = vmatpush1.bf16.msra.mxu0 0
    %223 = vmatprep.subr.bf16.mxu0 0
    %224 = vmatpush1.bf16.msra.mxu0 0
    %225 = vmatprep.subr.bf16.mxu0 0
    %226 = vmatpush1.bf16.msra.mxu0 0
    %227 = vmatprep.subr.bf16.mxu0 0
    %228 = vmatpush1.bf16.msra.mxu0 0
    %229 = vmatprep.subr.bf16.mxu0 0
    %230 = vmatpush1.bf16.msra.mxu0 0
    %231 = vmatprep.subr.bf16.mxu0 0
    %232 = vmatpush1.bf16.msra.mxu0 0
    %233 = vmatprep.subr.bf16.mxu0 0
    %234 = vmatpush1.bf16.msra.mxu0 0
    %235 = vmatprep.subr.bf16.mxu0 0
    %236 = vmatpush1.bf16.msra.mxu0 0
    %237 = vmatprep.mubr.bf16.mxu0 0
    %238 = vmatmul.mubr.bf16.gmra.mrb[0].mxu0 %v155
    %v239 = vpop.f32.mrb[0].mxu0
    %v240 = vadd.f32 0.0, %v239
    %v241 = vpop.f32.mrb[0].mxu0
    %v242 = vpop.f32.mrb[0].mxu0
    %v243 = vpop.f32.mrb[0].mxu0
    %244 = vdwg.mxu0
    %vm245 = vcmask 58368
    %v246 = vsel %vm245, %v80, 0.0
    %247 = vadd.xlane.f32.xlu0 %v246
    %v248 = vpop.xlane.xlu0 %247
    %v249 = vmax.f32 %v248, 1e-09
    %v250 = vrcp.pop %v249
    %v251 = vmul.f32 %v240, %v250
    %v252 = vld [vmem:[%s2] sm:$0x3]
    %v253 = vpack.c.bf16 %v252, %v252
    %v254 = vld [vmem:[#allocation5] sm:$0xf]
    %v255 = vld [vmem:[#allocation5 + $0x4] sm:$0xf]
    %v256 = vld [vmem:[#allocation5 + $0x8] sm:$0xf]
    %v257 = vld [vmem:[#allocation5 + $0xc] sm:$0xf]
    %v258 = vld [vmem:[#allocation5 + $0x10] sm:$0xf]
    %v259 = vld [vmem:[#allocation5 + $0x14] sm:$0xf]
    %v260 = vld [vmem:[#allocation5 + $0x18] sm:$0xf]
    %v261 = vld [vmem:[#allocation5 + $0x1c] sm:$0xf]
    %v262 = vld [vmem:[#allocation5 + $0x20] sm:$0xf]
    %v263 = vld [vmem:[#allocation5 + $0x24] sm:$0xf]
    %v264 = vld [vmem:[#allocation5 + $0x28] sm:$0xf]
    %v265 = vld [vmem:[#allocation5 + $0x2c] sm:$0xf]
    %v266 = vld [vmem:[#allocation5 + $0x30] sm:$0xf]
    %v267 = vld [vmem:[#allocation5 + $0x34] sm:$0xf]
    %v268 = vld [vmem:[#allocation5 + $0x38] sm:$0xf]
    %v269 = vld [vmem:[#allocation5 + $0x3c] sm:$0xf]
    %v270 = vld [vmem:[%s5] sm:$0x1]
    %v272 = vlaneseq
    %v273 = vshrl.u32 %v272, 7
    %v274 = vsub.s32 0, %v273
    %v275 = vrot.slane %v270, %v274
    %v293 = vunpack.c.l.b16 %v254
    %v294 = vunpack.c.l.b16 %v255
    %v295 = vunpack.c.l.b16 %v256
    %v296 = vunpack.c.l.b16 %v257
    %v297 = vunpack.c.l.b16 %v258
    %v298 = vunpack.c.l.b16 %v259
    %v299 = vunpack.c.l.b16 %v260
    %v300 = vunpack.c.l.b16 %v261
    %v301 = vunpack.c.l.b16 %v262
    %v302 = vunpack.c.l.b16 %v263
    %v303 = vunpack.c.l.b16 %v264
    %v304 = vunpack.c.l.b16 %v265
    %v305 = vunpack.c.l.b16 %v266
    %v306 = vunpack.c.l.b16 %v267
    %v307 = vunpack.c.l.b16 %v268
    %v308 = vunpack.c.l.b16 %v269
    %v309 = vpack.c.b16 %v294, %v293
    %v310 = vpack.c.b16 %v296, %v295
    %v311 = vpack.c.b16 %v298, %v297
    %v312 = vpack.c.b16 %v300, %v299
    %v313 = vpack.c.b16 %v302, %v301
    %v314 = vpack.c.b16 %v304, %v303
    %v315 = vpack.c.b16 %v306, %v305
    %v316 = vpack.c.b16 %v308, %v307
    %325 = vmatprep.subr.bf16.mxu0 0
    %326 = vmatpush1.bf16.msra.mxu0 %v309
    %327 = vmatprep.subr.bf16.mxu0 0
    %328 = vmatpush1.bf16.msra.mxu0 %v310
    %329 = vmatprep.subr.bf16.mxu0 0
    %330 = vmatpush1.bf16.msra.mxu0 %v311
    %331 = vmatprep.subr.bf16.mxu0 0
    %332 = vmatpush1.bf16.msra.mxu0 %v312
    %333 = vmatprep.subr.bf16.mxu0 0
    %334 = vmatpush1.bf16.msra.mxu0 %v313
    %335 = vmatprep.subr.bf16.mxu0 0
    %336 = vmatpush1.bf16.msra.mxu0 %v314
    %337 = vmatprep.subr.bf16.mxu0 0
    %338 = vmatpush1.bf16.msra.mxu0 %v315
    %339 = vmatprep.subr.bf16.mxu0 0
    %340 = vmatpush1.bf16.msra.mxu0 %v316
    %341 = vmatprep.subr.bf16.mxu0 0
    %342 = vmatpush1.bf16.msra.mxu0 0
    %343 = vmatprep.subr.bf16.mxu0 0
    %344 = vmatpush1.bf16.msra.mxu0 0
    %345 = vmatprep.subr.bf16.mxu0 0
    %346 = vmatpush1.bf16.msra.mxu0 0
    %347 = vmatprep.subr.bf16.mxu0 0
    %348 = vmatpush1.bf16.msra.mxu0 0
    %349 = vmatprep.subr.bf16.mxu0 0
    %350 = vmatpush1.bf16.msra.mxu0 0
    %351 = vmatprep.subr.bf16.mxu0 0
    %352 = vmatpush1.bf16.msra.mxu0 0
    %353 = vmatprep.subr.bf16.mxu0 0
    %354 = vmatpush1.bf16.msra.mxu0 0
    %355 = vmatprep.subr.bf16.mxu0 0
    %356 = vmatpush1.bf16.msra.mxu0 0
    %357 = vmatprep.mubr.bf16.mxu0 0
    %358 = vmatmul.mubr.bf16.gmra.mrb[0].mxu0 %v253
    %v359 = vpop.f32.mrb[0].mxu0
    %v360 = vadd.f32 %v275, %v359
    %v361 = vpop.f32.mrb[0].mxu0
    %v362 = vpop.f32.mrb[0].mxu0
    %v363 = vpop.f32.mrb[0].mxu0
    %364 = vdwg.mxu0
    %v365 = vmax.f32 %v360, 0.0
    %v366 = vpack.c.bf16 %v251, %v251
    %v367 = vpack.c.bf16 %v365, %v365
    %v368 = vld [vmem:[#allocation7] sm:$0xf]
    %v369 = vld [vmem:[#allocation7 + $0x4] sm:$0xf]
    %v370 = vld [vmem:[#allocation7 + $0x8] sm:$0xf]
    %v371 = vld [vmem:[#allocation7 + $0xc] sm:$0xf]
    %v372 = vld [vmem:[#allocation7 + $0x10] sm:$0xf]
    %v373 = vld [vmem:[#allocation7 + $0x14] sm:$0xf]
    %v374 = vld [vmem:[#allocation7 + $0x18] sm:$0xf]
    %v375 = vld [vmem:[#allocation7 + $0x1c] sm:$0xf]
    %v376 = vld [vmem:[#allocation7 + $0x20] sm:$0xf]
    %v377 = vld [vmem:[#allocation7 + $0x24] sm:$0xf]
    %v378 = vld [vmem:[#allocation7 + $0x28] sm:$0xf]
    %v379 = vld [vmem:[#allocation7 + $0x2c] sm:$0xf]
    %v380 = vld [vmem:[#allocation7 + $0x30] sm:$0xf]
    %v381 = vld [vmem:[#allocation7 + $0x34] sm:$0xf]
    %v382 = vld [vmem:[#allocation7 + $0x38] sm:$0xf]
    %v383 = vld [vmem:[#allocation7 + $0x3c] sm:$0xf]
    %v384 = vld [vmem:[#allocation7 + $0x40] sm:$0xf]
    %v385 = vld [vmem:[#allocation7 + $0x44] sm:$0xf]
    %v386 = vld [vmem:[#allocation7 + $0x48] sm:$0xf]
    %v387 = vld [vmem:[#allocation7 + $0x4c] sm:$0xf]
    %v388 = vld [vmem:[#allocation7 + $0x50] sm:$0xf]
    %v389 = vld [vmem:[#allocation7 + $0x54] sm:$0xf]
    %v390 = vld [vmem:[#allocation7 + $0x58] sm:$0xf]
    %v391 = vld [vmem:[#allocation7 + $0x5c] sm:$0xf]
    %v392 = vld [vmem:[#allocation7 + $0x60] sm:$0xf]
    %v393 = vld [vmem:[#allocation7 + $0x64] sm:$0xf]
    %v394 = vld [vmem:[#allocation7 + $0x68] sm:$0xf]
    %v395 = vld [vmem:[#allocation7 + $0x6c] sm:$0xf]
    %v396 = vld [vmem:[#allocation7 + $0x70] sm:$0xf]
    %v397 = vld [vmem:[#allocation7 + $0x74] sm:$0xf]
    %v398 = vld [vmem:[#allocation7 + $0x78] sm:$0xf]
    %v399 = vld [vmem:[#allocation7 + $0x7c] sm:$0xf]
    %v400 = vld [vmem:[%s7] sm:$0x1]
    %v402 = vlaneseq
    %v403 = vshrl.u32 %v402, 7
    %v404 = vsub.s32 0, %v403
    %v405 = vrot.slane %v400, %v404
    %v439 = vunpack.c.l.b16 %v368
    %v440 = vunpack.c.l.b16 %v369
    %v441 = vunpack.c.l.b16 %v370
    %v442 = vunpack.c.l.b16 %v371
    %v443 = vunpack.c.l.b16 %v372
    %v444 = vunpack.c.l.b16 %v373
    %v445 = vunpack.c.l.b16 %v374
    %v446 = vunpack.c.l.b16 %v375
    %v447 = vunpack.c.l.b16 %v376
    %v448 = vunpack.c.l.b16 %v377
    %v449 = vunpack.c.l.b16 %v378
    %v450 = vunpack.c.l.b16 %v379
    %v451 = vunpack.c.l.b16 %v380
    %v452 = vunpack.c.l.b16 %v381
    %v453 = vunpack.c.l.b16 %v382
    %v454 = vunpack.c.l.b16 %v383
    %v455 = vunpack.c.l.b16 %v384
    %v456 = vunpack.c.l.b16 %v385
    %v457 = vunpack.c.l.b16 %v386
    %v458 = vunpack.c.l.b16 %v387
    %v459 = vunpack.c.l.b16 %v388
    %v460 = vunpack.c.l.b16 %v389
    %v461 = vunpack.c.l.b16 %v390
    %v462 = vunpack.c.l.b16 %v391
    %v463 = vunpack.c.l.b16 %v392
    %v464 = vunpack.c.l.b16 %v393
    %v465 = vunpack.c.l.b16 %v394
    %v466 = vunpack.c.l.b16 %v395
    %v467 = vunpack.c.l.b16 %v396
    %v468 = vunpack.c.l.b16 %v397
    %v469 = vunpack.c.l.b16 %v398
    %v470 = vunpack.c.l.b16 %v399
    %v471 = vpack.c.b16 %v440, %v439
    %v472 = vpack.c.b16 %v442, %v441
    %v473 = vpack.c.b16 %v444, %v443
    %v474 = vpack.c.b16 %v446, %v445
    %v475 = vpack.c.b16 %v448, %v447
    %v476 = vpack.c.b16 %v450, %v449
    %v477 = vpack.c.b16 %v452, %v451
    %v478 = vpack.c.b16 %v454, %v453
    %v479 = vpack.c.b16 %v456, %v455
    %v480 = vpack.c.b16 %v458, %v457
    %v481 = vpack.c.b16 %v460, %v459
    %v482 = vpack.c.b16 %v462, %v461
    %v483 = vpack.c.b16 %v464, %v463
    %v484 = vpack.c.b16 %v466, %v465
    %v485 = vpack.c.b16 %v468, %v467
    %v486 = vpack.c.b16 %v470, %v469
    %503 = vmatprep.subr.bf16.mxu0 0
    %504 = vmatpush1.bf16.msra.mxu0 %v471
    %505 = vmatprep.subr.bf16.mxu0 0
    %506 = vmatpush1.bf16.msra.mxu0 %v472
    %507 = vmatprep.subr.bf16.mxu0 0
    %508 = vmatpush1.bf16.msra.mxu0 %v473
    %509 = vmatprep.subr.bf16.mxu0 0
    %510 = vmatpush1.bf16.msra.mxu0 %v474
    %511 = vmatprep.subr.bf16.mxu0 0
    %512 = vmatpush1.bf16.msra.mxu0 %v475
    %513 = vmatprep.subr.bf16.mxu0 0
    %514 = vmatpush1.bf16.msra.mxu0 %v476
    %515 = vmatprep.subr.bf16.mxu0 0
    %516 = vmatpush1.bf16.msra.mxu0 %v477
    %517 = vmatprep.subr.bf16.mxu0 0
    %518 = vmatpush1.bf16.msra.mxu0 %v478
    %519 = vmatprep.subr.bf16.mxu0 0
    %520 = vmatpush1.bf16.msra.mxu0 %v479
    %521 = vmatprep.subr.bf16.mxu0 0
    %522 = vmatpush1.bf16.msra.mxu0 %v480
    %523 = vmatprep.subr.bf16.mxu0 0
    %524 = vmatpush1.bf16.msra.mxu0 %v481
    %525 = vmatprep.subr.bf16.mxu0 0
    %526 = vmatpush1.bf16.msra.mxu0 %v482
    %527 = vmatprep.subr.bf16.mxu0 0
    %528 = vmatpush1.bf16.msra.mxu0 %v483
    %529 = vmatprep.subr.bf16.mxu0 0
    %530 = vmatpush1.bf16.msra.mxu0 %v484
    %531 = vmatprep.subr.bf16.mxu0 0
    %532 = vmatpush1.bf16.msra.mxu0 %v485
    %533 = vmatprep.subr.bf16.mxu0 0
    %534 = vmatpush1.bf16.msra.mxu0 %v486
    %535 = vmatprep.mubr.bf16.mxu0 %v367
    %536 = vmatmul.mubr.bf16.gmra.mrb[0].mxu0 %v366
    %v537 = vpop.f32.mrb[0].mxu0
    %v538 = vadd.f32 %v405, %v537
    %v539 = vpop.f32.mrb[0].mxu0
    %v540 = vpop.f32.mrb[0].mxu0
    %v541 = vpop.f32.mrb[0].mxu0
    %542 = vdwg.mxu0
    %v543 = vmax.f32 %v538, 0.0
    %v544 = vld [vmem:[%s8] sm:$0x1]
    %v546 = vlaneseq
    %v547 = vshrl.u32 %v546, 7
    %v548 = vsub.s32 0, %v547
    %v549 = vrot.slane %v544, %v548
    %v551 = vmul.f32 %v543, %v549
    %vm552 = vcmask 1041408
    %v553 = vsel %vm552, %v551, 0.0
    %554 = vadd.xlane.f32.xlu0 %v553
    %v555 = vpop.xlane.xlu0 %554
    %v556 = vld [vmem:[#allocation2] sm:$0x1]
    %v558 = vlaneseq
    %v559 = vshrl.u32 %v558, 7
    %v560 = vsub.s32 0, %v559
    %v561 = vrot.slane %v556, %v560
    %v563 = vadd.f32 %v555, %v561
    %v564 = vsub.f32 0.0, %v563
    %v565 = vmul.f32 %v564, 1.442695
    %v566 = vpow.pop %v565
    %v567 = vadd.f32 %v566, 1.0
    %v568 = vrcp.pop %v567
    %v569 = vmul.f32 1.0, %v568
    %vm570 = vcmask 1024
    %571 = vst.msk [vmem:[%s10] sm:$0x3] %vm570, %v569
    // Predicated region
    $region54: #{tpu_custom_call.1} parent=1 // pred_check
      _
    $region55: #{tpu_custom_call.1} parent=1 // pred_check_branch
      %573 = sbr.rel (0) target = $region57
    $region56: #{tpu_custom_call.1} parent=1 // pred_region
      _
    $region57: #{tpu_custom_call.1} parent=1 // pred_fallthru
      _
    // Predicated region
    $region58: #{tpu_custom_call.1} parent=1 // pred_check
      _
    $region59: #{tpu_custom_call.1} parent=1 // pred_check_branch
      %575 = sbr.rel (0) target = $region61
    $region60: #{tpu_custom_call.1} parent=1 // pred_region
      _
    $region61: #{tpu_custom_call.1} parent=1 // pred_fallthru
      _
    %576 = vsyncpa [#allocation4], 1
    %577 = vsyncpa [#allocation6], 1

</llo_original>
